<compile_context>
chip_gen: v6e
topology: v6e:2x2x1
jax: 0.10.0
libtpu: 0.0.40
codegen_flags: <defaults>
</compile_context>

<pallas_src>
import functools

import jax
import jax.numpy as jnp
from jax.experimental import pallas as pl
from jax.experimental.pallas import tpu as pltpu

IEPS_DEFAULT = 1e-9  # ieps_default in the source codebase


# ---------------------------------------------------------------------------
# Kernels
# ---------------------------------------------------------------------------

def _swish_kernel(x_ref, o_ref, *, beta):
    # dim=None: plain swish, purely elementwise.
    x = x_ref[...].astype(jnp.float32)
    bx = x if beta is None else jnp.float32(beta) * x
    o_ref[...] = (jax.nn.sigmoid(bx) * x).astype(o_ref.dtype)


def _finish(x, mean, sumsq, n, eps, beta, o_ref):
    # Two-pass statistics: mean and sum((x - mean)^2) are computed by the caller.
    var = sumsq * (1.0 / (n - 1.0))                  # unbiased (ddof=1), matches torch.std
    denom = jnp.sqrt(jnp.maximum(var, 0.0)) + jnp.float32(eps)
    norm_x = (x - mean) / denom                       # exact f32 divide (mem-bound kernel)
    bx = x if beta is None else jnp.float32(beta) * x
    # Note: on a ragged last grid block the pad rows may produce non-finite garbage
    # here; the store below is masked by Pallas, so results stay correct.
    o_ref[...] = (jax.nn.sigmoid(bx) * norm_x).astype(o_ref.dtype)


def _normswish_rowwise_kernel(x_ref, o_ref, *, eps, beta, features):
    # Block (tile_rows, features), features % 128 == 0: stats over the full last axis.
    # TODO(synk): on v7x, pre-fold the features//128 lane-columns on the VALU (or offload
    #             s/ss to the MXU) before the single 128-lane XLU reduce if a bundle dump
    #             shows the reductions poking out from under the DMA.
    x = x_ref[...].astype(jnp.float32)
    n = float(features)
    mean = jnp.sum(x, axis=-1, keepdims=True) * (1.0 / n)
    d = x - mean
    sumsq = jnp.sum(d * d, axis=-1, keepdims=True)
    _finish(x, mean, sumsq, n, eps, beta, o_ref)


def _segmented_allsum(v, seg, lane_iota):
    """All-reduce-sum within each aligned block of `seg` lanes (seg = power of two).

    Hypercube butterfly: log2(seg) stages, each = two lane rotations + select + add.
    Exact f32 (adds only); every lane ends with its segment's total.  The XOR partner
    lane never crosses a segment boundary, so the circular wrap of roll is never selected.
    """
    d = 1
    while d < seg:
        up = jnp.roll(v, -d, axis=-1)     # value of lane (l + d)   [pltpu.roll on HW]
        dn = jnp.roll(v, d, axis=-1)      # value of lane (l - d)
        v = v + jnp.where((lane_iota & d) == 0, up, dn)   # value of lane (l XOR d)
        d *= 2
    return v


def _normswish_packed_kernel(x_ref, o_ref, *, eps, beta, features):
    # Block (tile_rows, 128): 128 // features logical rows packed per 128-lane row
    # (lane-dense loads/stores).  Per-row stats via the O(log2(features)) butterfly.
    x = x_ref[...].astype(jnp.float32)
    lane = jax.lax.broadcasted_iota(jnp.int32, (1, x.shape[-1]), 1)
    n = float(features)
    mean = _segmented_allsum(x, features, lane) * (1.0 / n)
    d = x - mean
    sumsq = _segmented_allsum(d * d, features, lane)
    _finish(x, mean, sumsq, n, eps, beta, o_ref)


# ---------------------------------------------------------------------------
# Wrapper
# ---------------------------------------------------------------------------

def _tpu_tiling_defaults():
    """Generation-dependent (target_block_bytes, vmem_limit_bytes).

    v5e/v6e have 128 MiB physical VMEM -> larger blocks amortize the ~0.35 us/step
    overhead; v7x has 64 MiB -> stay conservative.  Unknown / interpret -> safe values.
    """
    try:
        vmem = int(pltpu.get_tpu_info().vmem_capacity_bytes)
    except Exception:
        vmem = 0
    if vmem >= 100 * 1024 * 1024:            # v5e / v6e (128 MiB physical VMEM)
        return 8 << 20, 96 * 1024 * 1024
    return 4 << 20, 48 * 1024 * 1024         # v7x (64 MiB) or unknown backend


def _choose_tile_rows(rows, width, itemsize, target_bytes, min_grid=8):
    """Pick a row tile so each block is ~target_bytes of f32-equivalent data, the block
    sublane count stays a multiple of the native tile (8 / 16), and — when the array is
    large enough — the grid has at least `min_grid` steps (pipelining + megacore)."""
    row_bytes = max(width, 1) * 4            # f32-equivalent: in-kernel temps are f32
    mult = 16 if itemsize < 4 else 8         # native sublane tile
    if rows <= mult:
        return max(rows, 1)                  # block == full (small) array dim
    tr = max(mult, (target_bytes // row_bytes) // mult * mult)
    cap = ((rows // min_grid) // mult) * mult
    if cap >= mult:                          # keep grid >= min_grid when possible
        tr = min(tr, cap)
    tr = min(tr, (rows // mult) * mult)      # ragged last block handled by Pallas
    return max(int(tr), mult)


def cust_swish(x, *, beta=None, dim=-1, eps=IEPS_DEFAULT,
               target_block_bytes=None, vmem_limit_bytes=None):
    """Pallas implementation of CustSwish.forward.

    beta=None corresponds to the module default (beta=1.0, freeze_beta=True).
    dim=-1 is the 'normswish' path; dim=None is plain swish.
    """
    orig_shape = x.shape
    nelem = int(x.size)
    if nelem == 0:
        return x
    itemsize = jnp.dtype(x.dtype).itemsize

    default_block, default_vmem = _tpu_tiling_defaults()
    if target_block_bytes is None:
        target_block_bytes = default_block
    if vmem_limit_bytes is None:
        vmem_limit_bytes = default_vmem

    if dim is None:
        # Plain swish: elementwise; pick the widest lane-dense 2D view that divides nelem.
        width = None
        for w in (2048, 1024, 512, 256, 128):
            if nelem % w == 0:
                width = w
                break
        if width is None:
            # TODO(synk): pad the flattened array to a multiple of 128 (lane-dense) for
            #             element counts not divisible by 128; masked narrow stores for now.
            width = orig_shape[-1]
        rows_e = nelem // width
        kernel = functools.partial(_swish_kernel, beta=beta)
    else:
        assert dim in (-1, x.ndim - 1), "only last-axis normalization supported"
        features = orig_shape[-1]
        assert features > 1, "unbiased std requires at least 2 features"
        rows = nelem // features
        if features % 128 == 0:
            # Already lane-dense: row-wise stats.
            width, rows_e = features, rows
            kernel = functools.partial(
                _normswish_rowwise_kernel, eps=eps, beta=beta, features=features)
        elif (128 % features == 0) and rows % (128 // features) == 0:
            # Pack several logical rows per 128-lane row (lane-dense loads/stores),
            # segmented stats via the log2(features) butterfly.
            pack = 128 // features
            width, rows_e = 128, rows // pack
            kernel = functools.partial(
                _normswish_packed_kernel, eps=eps, beta=beta, features=features)
        else:
            # TODO(synk): lane-sparse fallback (features like 48/96/200): pad rows to a
            #             lane-dense packing inside the block and mask pad lanes out of
            #             the statistics to recover store bandwidth.
            width, rows_e = features, rows
            kernel = functools.partial(
                _normswish_rowwise_kernel, eps=eps, beta=beta, features=features)

    x2d = x.reshape(rows_e, width)                      # contiguous -> free reshape
    tile_rows = _choose_tile_rows(rows_e, width, itemsize, target_block_bytes)
    grid = (pl.cdiv(rows_e, tile_rows),)                # ragged last block handled by Pallas

    out2d = pl.pallas_call(
        kernel,
        out_shape=jax.ShapeDtypeStruct((rows_e, width), x.dtype),
        grid=grid,
        in_specs=[pl.BlockSpec((tile_rows, width), lambda i: (i, 0))],
        out_specs=pl.BlockSpec((tile_rows, width), lambda i: (i, 0)),
        compiler_params=pltpu.CompilerParams(
            dimension_semantics=("parallel",),          # megacore-shard the row axis
            vmem_limit_bytes=vmem_limit_bytes,
        ),
        cost_estimate=pl.CostEstimate(
            flops=14 * nelem,
            transcendentals=nelem,                      # sigmoid (+ sqrt/div per row)
            bytes_accessed=2 * nelem * itemsize,        # one read + one write pass
        ),
    )(x2d)

    return out2d.reshape(orig_shape)


# ---------------------------------------------------------------------------
# Reference & self-test
# ---------------------------------------------------------------------------

def _reference(x, *, beta=None, dim=-1, eps=IEPS_DEFAULT):
    xf = x.astype(jnp.float32)
    if dim is None:
        norm = xf
    else:
        mean = jnp.mean(xf, axis=dim, keepdims=True)
        var = jnp.var(xf, axis=dim, keepdims=True, ddof=1)
        norm = (xf - mean) / (jnp.sqrt(var) + eps)
    bx = xf if beta is None else beta * xf
    return (jax.nn.sigmoid(bx) * norm).astype(x.dtype)


if __name__ == "__main__":
    key = jax.random.PRNGKey(0)
    # (batch=2, seq=8, hidden=32); normswish normalizes over hidden (last axis).
    x = jax.random.normal(key, (2, 8, 32), dtype=jnp.float32)

    # normswish path (features=32 -> lane-packed butterfly kernel, 4 rows per lane row)
    out = jax.block_until_ready(cust_swish(x, beta=None, dim=-1, eps=IEPS_DEFAULT))
    ref = _reference(x, beta=None, dim=-1, eps=IEPS_DEFAULT)
    assert out.shape == x.shape and out.dtype == x.dtype
    err = float(jnp.max(jnp.abs(out - ref)))
    assert err < 1e-5, f"normswish packed path mismatch: {err}"

    # plain swish path (dim=None)
    out2 = jax.block_until_ready(cust_swish(x, beta=None, dim=None))
    ref2 = _reference(x, beta=None, dim=None)
    assert float(jnp.max(jnp.abs(out2 - ref2))) < 1e-5

    # lane-dense row-wise path (features % 128 == 0) with a scalar beta
    x3 = jax.random.normal(jax.random.PRNGKey(1), (4, 16, 256), dtype=jnp.float32)
    out3 = jax.block_until_ready(cust_swish(x3, beta=0.75, dim=-1))
    ref3 = _reference(x3, beta=0.75, dim=-1)
    assert float(jnp.max(jnp.abs(out3 - ref3))) < 1e-5

    print("KERNEL_OK")
</pallas_src>

<mosaic_0001>
module attributes {stable_mosaic.version = 11 : i64} {
  func.func @_normswish_packed_kernel(%arg0: i32, %arg1: memref<4x128xf32, #tpu.memory_space<vmem>>, %arg2: memref<4x128xf32, #tpu.memory_space<vmem>>) attributes {dimension_semantics = [#tpu.dimension_semantics<parallel>], iteration_bounds = array<i64: 1>, scalar_prefetch = 0 : i64, scratch_operands = 0 : i64, tpu.core_type = #tpu.core_type<tc>, window_params = [{transform_indices = @transform_0, window_bounds = array<i64: 4, 128>}, {transform_indices = @transform_1, window_bounds = array<i64: 4, 128>}]} {
    %c0 = arith.constant 0 : index
    %c0_0 = arith.constant 0 : index
    %0 = vector.load %arg1[%c0, %c0_0] : memref<4x128xf32, #tpu.memory_space<vmem>>, vector<4x128xf32>
    %1 = tpu.iota {dimensions = array<i32: 1>} : vector<1x128xi32>
    %2 = vector.extract_strided_slice %0 {offsets = [0, 1], sizes = [4, 127], strides = [1, 1]} : vector<4x128xf32> to vector<4x127xf32>
    %3 = vector.extract_strided_slice %0 {offsets = [0, 0], sizes = [4, 1], strides = [1, 1]} : vector<4x128xf32> to vector<4x1xf32>
    %4 = tpu.concatenate %2, %3 in 1 : vector<4x127xf32>, vector<4x1xf32> -> vector<4x128xf32>
    %5 = vector.extract_strided_slice %0 {offsets = [0, 127], sizes = [4, 1], strides = [1, 1]} : vector<4x128xf32> to vector<4x1xf32>
    %6 = vector.extract_strided_slice %0 {offsets = [0, 0], sizes = [4, 127], strides = [1, 1]} : vector<4x128xf32> to vector<4x127xf32>
    %7 = tpu.concatenate %5, %6 in 1 : vector<4x1xf32>, vector<4x127xf32> -> vector<4x128xf32>
    %c1_i32 = arith.constant 1 : i32
    %8 = vector.broadcast %c1_i32 : i32 to vector<1x128xi32>
    %9 = arith.andi %1, %8 : vector<1x128xi32>
    %c0_i32 = arith.constant 0 : i32
    %10 = vector.broadcast %c0_i32 : i32 to vector<1x128xi32>
    %11 = arith.cmpi eq, %9, %10 : vector<1x128xi32>
    %12 = vector.shape_cast %11 : vector<1x128xi1> to vector<1x128xi1>
    %13 = vector.broadcast %12 : vector<1x128xi1> to vector<4x128xi1>
    %14 = arith.select %13, %4, %7 : vector<4x128xi1>, vector<4x128xf32>
    %15 = arith.addf %0, %14 : vector<4x128xf32>
    %16 = vector.extract_strided_slice %15 {offsets = [0, 2], sizes = [4, 126], strides = [1, 1]} : vector<4x128xf32> to vector<4x126xf32>
    %17 = vector.extract_strided_slice %15 {offsets = [0, 0], sizes = [4, 2], strides = [1, 1]} : vector<4x128xf32> to vector<4x2xf32>
    %18 = tpu.concatenate %16, %17 in 1 : vector<4x126xf32>, vector<4x2xf32> -> vector<4x128xf32>
    %19 = vector.extract_strided_slice %15 {offsets = [0, 126], sizes = [4, 2], strides = [1, 1]} : vector<4x128xf32> to vector<4x2xf32>
    %20 = vector.extract_strided_slice %15 {offsets = [0, 0], sizes = [4, 126], strides = [1, 1]} : vector<4x128xf32> to vector<4x126xf32>
    %21 = tpu.concatenate %19, %20 in 1 : vector<4x2xf32>, vector<4x126xf32> -> vector<4x128xf32>
    %c2_i32 = arith.constant 2 : i32
    %22 = vector.broadcast %c2_i32 : i32 to vector<1x128xi32>
    %23 = arith.andi %1, %22 : vector<1x128xi32>
    %c0_i32_1 = arith.constant 0 : i32
    %24 = vector.broadcast %c0_i32_1 : i32 to vector<1x128xi32>
    %25 = arith.cmpi eq, %23, %24 : vector<1x128xi32>
    %26 = vector.shape_cast %25 : vector<1x128xi1> to vector<1x128xi1>
    %27 = vector.broadcast %26 : vector<1x128xi1> to vector<4x128xi1>
    %28 = arith.select %27, %18, %21 : vector<4x128xi1>, vector<4x128xf32>
    %29 = arith.addf %15, %28 : vector<4x128xf32>
    %30 = vector.extract_strided_slice %29 {offsets = [0, 4], sizes = [4, 124], strides = [1, 1]} : vector<4x128xf32> to vector<4x124xf32>
    %31 = vector.extract_strided_slice %29 {offsets = [0, 0], sizes = [4, 4], strides = [1, 1]} : vector<4x128xf32> to vector<4x4xf32>
    %32 = tpu.concatenate %30, %31 in 1 : vector<4x124xf32>, vector<4x4xf32> -> vector<4x128xf32>
    %33 = vector.extract_strided_slice %29 {offsets = [0, 124], sizes = [4, 4], strides = [1, 1]} : vector<4x128xf32> to vector<4x4xf32>
    %34 = vector.extract_strided_slice %29 {offsets = [0, 0], sizes = [4, 124], strides = [1, 1]} : vector<4x128xf32> to vector<4x124xf32>
    %35 = tpu.concatenate %33, %34 in 1 : vector<4x4xf32>, vector<4x124xf32> -> vector<4x128xf32>
    %c4_i32 = arith.constant 4 : i32
    %36 = vector.broadcast %c4_i32 : i32 to vector<1x128xi32>
    %37 = arith.andi %1, %36 : vector<1x128xi32>
    %c0_i32_2 = arith.constant 0 : i32
    %38 = vector.broadcast %c0_i32_2 : i32 to vector<1x128xi32>
    %39 = arith.cmpi eq, %37, %38 : vector<1x128xi32>
    %40 = vector.shape_cast %39 : vector<1x128xi1> to vector<1x128xi1>
    %41 = vector.broadcast %40 : vector<1x128xi1> to vector<4x128xi1>
    %42 = arith.select %41, %32, %35 : vector<4x128xi1>, vector<4x128xf32>
    %43 = arith.addf %29, %42 : vector<4x128xf32>
    %44 = vector.extract_strided_slice %43 {offsets = [0, 8], sizes = [4, 120], strides = [1, 1]} : vector<4x128xf32> to vector<4x120xf32>
    %45 = vector.extract_strided_slice %43 {offsets = [0, 0], sizes = [4, 8], strides = [1, 1]} : vector<4x128xf32> to vector<4x8xf32>
    %46 = tpu.concatenate %44, %45 in 1 : vector<4x120xf32>, vector<4x8xf32> -> vector<4x128xf32>
    %47 = vector.extract_strided_slice %43 {offsets = [0, 120], sizes = [4, 8], strides = [1, 1]} : vector<4x128xf32> to vector<4x8xf32>
    %48 = vector.extract_strided_slice %43 {offsets = [0, 0], sizes = [4, 120], strides = [1, 1]} : vector<4x128xf32> to vector<4x120xf32>
    %49 = tpu.concatenate %47, %48 in 1 : vector<4x8xf32>, vector<4x120xf32> -> vector<4x128xf32>
    %c8_i32 = arith.constant 8 : i32
    %50 = vector.broadcast %c8_i32 : i32 to vector<1x128xi32>
    %51 = arith.andi %1, %50 : vector<1x128xi32>
    %c0_i32_3 = arith.constant 0 : i32
    %52 = vector.broadcast %c0_i32_3 : i32 to vector<1x128xi32>
    %53 = arith.cmpi eq, %51, %52 : vector<1x128xi32>
    %54 = vector.shape_cast %53 : vector<1x128xi1> to vector<1x128xi1>
    %55 = vector.broadcast %54 : vector<1x128xi1> to vector<4x128xi1>
    %56 = arith.select %55, %46, %49 : vector<4x128xi1>, vector<4x128xf32>
    %57 = arith.addf %43, %56 : vector<4x128xf32>
    %58 = vector.extract_strided_slice %57 {offsets = [0, 16], sizes = [4, 112], strides = [1, 1]} : vector<4x128xf32> to vector<4x112xf32>
    %59 = vector.extract_strided_slice %57 {offsets = [0, 0], sizes = [4, 16], strides = [1, 1]} : vector<4x128xf32> to vector<4x16xf32>
    %60 = tpu.concatenate %58, %59 in 1 : vector<4x112xf32>, vector<4x16xf32> -> vector<4x128xf32>
    %61 = vector.extract_strided_slice %57 {offsets = [0, 112], sizes = [4, 16], strides = [1, 1]} : vector<4x128xf32> to vector<4x16xf32>
    %62 = vector.extract_strided_slice %57 {offsets = [0, 0], sizes = [4, 112], strides = [1, 1]} : vector<4x128xf32> to vector<4x112xf32>
    %63 = tpu.concatenate %61, %62 in 1 : vector<4x16xf32>, vector<4x112xf32> -> vector<4x128xf32>
    %c16_i32 = arith.constant 16 : i32
    %64 = vector.broadcast %c16_i32 : i32 to vector<1x128xi32>
    %65 = arith.andi %1, %64 : vector<1x128xi32>
    %c0_i32_4 = arith.constant 0 : i32
    %66 = vector.broadcast %c0_i32_4 : i32 to vector<1x128xi32>
    %67 = arith.cmpi eq, %65, %66 : vector<1x128xi32>
    %68 = vector.shape_cast %67 : vector<1x128xi1> to vector<1x128xi1>
    %69 = vector.broadcast %68 : vector<1x128xi1> to vector<4x128xi1>
    %70 = arith.select %69, %60, %63 : vector<4x128xi1>, vector<4x128xf32>
    %71 = arith.addf %57, %70 : vector<4x128xf32>
    %cst = arith.constant 3.125000e-02 : f32
    %72 = vector.broadcast %cst : f32 to vector<4x128xf32>
    %73 = arith.mulf %71, %72 : vector<4x128xf32>
    %74 = arith.subf %0, %73 : vector<4x128xf32>
    %75 = arith.mulf %74, %74 : vector<4x128xf32>
    %76 = vector.extract_strided_slice %75 {offsets = [0, 1], sizes = [4, 127], strides = [1, 1]} : vector<4x128xf32> to vector<4x127xf32>
    %77 = vector.extract_strided_slice %75 {offsets = [0, 0], sizes = [4, 1], strides = [1, 1]} : vector<4x128xf32> to vector<4x1xf32>
    %78 = tpu.concatenate %76, %77 in 1 : vector<4x127xf32>, vector<4x1xf32> -> vector<4x128xf32>
    %79 = vector.extract_strided_slice %75 {offsets = [0, 127], sizes = [4, 1], strides = [1, 1]} : vector<4x128xf32> to vector<4x1xf32>
    %80 = vector.extract_strided_slice %75 {offsets = [0, 0], sizes = [4, 127], strides = [1, 1]} : vector<4x128xf32> to vector<4x127xf32>
    %81 = tpu.concatenate %79, %80 in 1 : vector<4x1xf32>, vector<4x127xf32> -> vector<4x128xf32>
    %c1_i32_5 = arith.constant 1 : i32
    %82 = vector.broadcast %c1_i32_5 : i32 to vector<1x128xi32>
    %83 = arith.andi %1, %82 : vector<1x128xi32>
    %c0_i32_6 = arith.constant 0 : i32
    %84 = vector.broadcast %c0_i32_6 : i32 to vector<1x128xi32>
    %85 = arith.cmpi eq, %83, %84 : vector<1x128xi32>
    %86 = vector.shape_cast %85 : vector<1x128xi1> to vector<1x128xi1>
    %87 = vector.broadcast %86 : vector<1x128xi1> to vector<4x128xi1>
    %88 = arith.select %87, %78, %81 : vector<4x128xi1>, vector<4x128xf32>
    %89 = arith.addf %75, %88 : vector<4x128xf32>
    %90 = vector.extract_strided_slice %89 {offsets = [0, 2], sizes = [4, 126], strides = [1, 1]} : vector<4x128xf32> to vector<4x126xf32>
    %91 = vector.extract_strided_slice %89 {offsets = [0, 0], sizes = [4, 2], strides = [1, 1]} : vector<4x128xf32> to vector<4x2xf32>
    %92 = tpu.concatenate %90, %91 in 1 : vector<4x126xf32>, vector<4x2xf32> -> vector<4x128xf32>
    %93 = vector.extract_strided_slice %89 {offsets = [0, 126], sizes = [4, 2], strides = [1, 1]} : vector<4x128xf32> to vector<4x2xf32>
    %94 = vector.extract_strided_slice %89 {offsets = [0, 0], sizes = [4, 126], strides = [1, 1]} : vector<4x128xf32> to vector<4x126xf32>
    %95 = tpu.concatenate %93, %94 in 1 : vector<4x2xf32>, vector<4x126xf32> -> vector<4x128xf32>
    %c2_i32_7 = arith.constant 2 : i32
    %96 = vector.broadcast %c2_i32_7 : i32 to vector<1x128xi32>
    %97 = arith.andi %1, %96 : vector<1x128xi32>
    %c0_i32_8 = arith.constant 0 : i32
    %98 = vector.broadcast %c0_i32_8 : i32 to vector<1x128xi32>
    %99 = arith.cmpi eq, %97, %98 : vector<1x128xi32>
    %100 = vector.shape_cast %99 : vector<1x128xi1> to vector<1x128xi1>
    %101 = vector.broadcast %100 : vector<1x128xi1> to vector<4x128xi1>
    %102 = arith.select %101, %92, %95 : vector<4x128xi1>, vector<4x128xf32>
    %103 = arith.addf %89, %102 : vector<4x128xf32>
    %104 = vector.extract_strided_slice %103 {offsets = [0, 4], sizes = [4, 124], strides = [1, 1]} : vector<4x128xf32> to vector<4x124xf32>
    %105 = vector.extract_strided_slice %103 {offsets = [0, 0], sizes = [4, 4], strides = [1, 1]} : vector<4x128xf32> to vector<4x4xf32>
    %106 = tpu.concatenate %104, %105 in 1 : vector<4x124xf32>, vector<4x4xf32> -> vector<4x128xf32>
    %107 = vector.extract_strided_slice %103 {offsets = [0, 124], sizes = [4, 4], strides = [1, 1]} : vector<4x128xf32> to vector<4x4xf32>
    %108 = vector.extract_strided_slice %103 {offsets = [0, 0], sizes = [4, 124], strides = [1, 1]} : vector<4x128xf32> to vector<4x124xf32>
    %109 = tpu.concatenate %107, %108 in 1 : vector<4x4xf32>, vector<4x124xf32> -> vector<4x128xf32>
    %c4_i32_9 = arith.constant 4 : i32
    %110 = vector.broadcast %c4_i32_9 : i32 to vector<1x128xi32>
    %111 = arith.andi %1, %110 : vector<1x128xi32>
    %c0_i32_10 = arith.constant 0 : i32
    %112 = vector.broadcast %c0_i32_10 : i32 to vector<1x128xi32>
    %113 = arith.cmpi eq, %111, %112 : vector<1x128xi32>
    %114 = vector.shape_cast %113 : vector<1x128xi1> to vector<1x128xi1>
    %115 = vector.broadcast %114 : vector<1x128xi1> to vector<4x128xi1>
    %116 = arith.select %115, %106, %109 : vector<4x128xi1>, vector<4x128xf32>
    %117 = arith.addf %103, %116 : vector<4x128xf32>
    %118 = vector.extract_strided_slice %117 {offsets = [0, 8], sizes = [4, 120], strides = [1, 1]} : vector<4x128xf32> to vector<4x120xf32>
    %119 = vector.extract_strided_slice %117 {offsets = [0, 0], sizes = [4, 8], strides = [1, 1]} : vector<4x128xf32> to vector<4x8xf32>
    %120 = tpu.concatenate %118, %119 in 1 : vector<4x120xf32>, vector<4x8xf32> -> vector<4x128xf32>
    %121 = vector.extract_strided_slice %117 {offsets = [0, 120], sizes = [4, 8], strides = [1, 1]} : vector<4x128xf32> to vector<4x8xf32>
    %122 = vector.extract_strided_slice %117 {offsets = [0, 0], sizes = [4, 120], strides = [1, 1]} : vector<4x128xf32> to vector<4x120xf32>
    %123 = tpu.concatenate %121, %122 in 1 : vector<4x8xf32>, vector<4x120xf32> -> vector<4x128xf32>
    %c8_i32_11 = arith.constant 8 : i32
    %124 = vector.broadcast %c8_i32_11 : i32 to vector<1x128xi32>
    %125 = arith.andi %1, %124 : vector<1x128xi32>
    %c0_i32_12 = arith.constant 0 : i32
    %126 = vector.broadcast %c0_i32_12 : i32 to vector<1x128xi32>
    %127 = arith.cmpi eq, %125, %126 : vector<1x128xi32>
    %128 = vector.shape_cast %127 : vector<1x128xi1> to vector<1x128xi1>
    %129 = vector.broadcast %128 : vector<1x128xi1> to vector<4x128xi1>
    %130 = arith.select %129, %120, %123 : vector<4x128xi1>, vector<4x128xf32>
    %131 = arith.addf %117, %130 : vector<4x128xf32>
    %132 = vector.extract_strided_slice %131 {offsets = [0, 16], sizes = [4, 112], strides = [1, 1]} : vector<4x128xf32> to vector<4x112xf32>
    %133 = vector.extract_strided_slice %131 {offsets = [0, 0], sizes = [4, 16], strides = [1, 1]} : vector<4x128xf32> to vector<4x16xf32>
    %134 = tpu.concatenate %132, %133 in 1 : vector<4x112xf32>, vector<4x16xf32> -> vector<4x128xf32>
    %135 = vector.extract_strided_slice %131 {offsets = [0, 112], sizes = [4, 16], strides = [1, 1]} : vector<4x128xf32> to vector<4x16xf32>
    %136 = vector.extract_strided_slice %131 {offsets = [0, 0], sizes = [4, 112], strides = [1, 1]} : vector<4x128xf32> to vector<4x112xf32>
    %137 = tpu.concatenate %135, %136 in 1 : vector<4x16xf32>, vector<4x112xf32> -> vector<4x128xf32>
    %c16_i32_13 = arith.constant 16 : i32
    %138 = vector.broadcast %c16_i32_13 : i32 to vector<1x128xi32>
    %139 = arith.andi %1, %138 : vector<1x128xi32>
    %c0_i32_14 = arith.constant 0 : i32
    %140 = vector.broadcast %c0_i32_14 : i32 to vector<1x128xi32>
    %141 = arith.cmpi eq, %139, %140 : vector<1x128xi32>
    %142 = vector.shape_cast %141 : vector<1x128xi1> to vector<1x128xi1>
    %143 = vector.broadcast %142 : vector<1x128xi1> to vector<4x128xi1>
    %144 = arith.select %143, %134, %137 : vector<4x128xi1>, vector<4x128xf32>
    %145 = arith.addf %131, %144 : vector<4x128xf32>
    %cst_15 = arith.constant 0.0322580636 : f32
    %146 = vector.broadcast %cst_15 : f32 to vector<4x128xf32>
    %147 = arith.mulf %145, %146 : vector<4x128xf32>
    %cst_16 = arith.constant 0.000000e+00 : f32
    %148 = vector.broadcast %cst_16 : f32 to vector<4x128xf32>
    %149 = arith.maximumf %147, %148 : vector<4x128xf32>
    %150 = math.sqrt %149 : vector<4x128xf32>
    %cst_17 = arith.constant 9.99999971E-10 : f32
    %151 = vector.broadcast %cst_17 : f32 to vector<4x128xf32>
    %152 = arith.addf %150, %151 : vector<4x128xf32>
    %153 = arith.subf %0, %73 : vector<4x128xf32>
    %154 = arith.divf %153, %152 : vector<4x128xf32>
    %155 = arith.negf %0 : vector<4x128xf32>
    %156 = math.exp %155 : vector<4x128xf32>
    %cst_18 = arith.constant 1.000000e+00 : f32
    %157 = vector.broadcast %cst_18 : f32 to vector<4x128xf32>
    %158 = arith.addf %157, %156 : vector<4x128xf32>
    %159 = arith.divf %157, %158 : vector<4x128xf32>
    %160 = arith.mulf %159, %154 : vector<4x128xf32>
    %c0_19 = arith.constant 0 : index
    %c0_20 = arith.constant 0 : index
    %161 = vector.load %arg2[%c0_19, %c0_20] : memref<4x128xf32, #tpu.memory_space<vmem>>, vector<4x128xf32>
    tpu.vector_store %arg2[%c0_19, %c0_20], %160 {strides = array<i32>} : memref<4x128xf32, #tpu.memory_space<vmem>>, vector<4x128xf32>,
    return
  }
  func.func @transform_0(%arg0: i32) -> (i32, i32) {
    %c0_i32 = arith.constant 0 : i32
    %c0_i32_0 = arith.constant 0 : i32
    return %arg0, %c0_i32 : i32, i32
  }
  func.func @transform_1(%arg0: i32) -> (i32, i32) {
    %c0_i32 = arith.constant 0 : i32
    %c0_i32_0 = arith.constant 0 : i32
    return %arg0, %c0_i32 : i32, i32
  }
}

</mosaic_0001>

<llo_original>
// kernel: tpu_custom_call.1
$region0: #{tpu_custom_call.1}
  #allocation0 [shape = 'u32[]', space=smem, size = 0x4, offset = 0x4, fixed_abs, tag = 'smem constant byte address 0x4 - core index']
  #allocation1 [shape = 'u32[144,128]{1,0:T(1,128)}', space=vmem, size = 0x12000, scoped, tag = 'internal scratch']
  %s0 = inlined_call_operand.hbm [shape: f32[4,128], index: 0, kind: input, shape index: {}]
  %s1 = inlined_call_operand.hbm [shape: f32[4,128], index: 1, kind: output, shape index: {}]
  %s2 = sld [smem:[#allocation0]]
  $region18: #{tpu_custom_call.1} parent=0
    _
  %s4 = ssub.s32 1, %s2
  %s5 = scalar_select 0, %s4, %s2
  $region1: #{tpu_custom_call.1} parent=0
    #allocation2 [shape = 'u8[2048]{0}', space=vmem, size = 0x800, scoped, tag = 'input window, operand 0, single buffered']
    #allocation3 [shape = 's32[1]{0}', space=sflag, size = 0x4, scoped, tag = 'scoped memory for tpu_custom_call.1']
    #allocation4 [shape = 's32[1]{0}', space=sflag, size = 0x4, scoped, tag = 'scoped memory for tpu_custom_call.1']
    #allocation5 [shape = 'u8[2048]{0}', space=vmem, size = 0x800, scoped, tag = 'output window, operand 0, single buffered']
    %6 = vsyncpa [#allocation3], 0
    %7 = vsyncpa [#allocation4], 0
    // Predicated region
    $region2: #{tpu_custom_call.1} parent=1 // pred_check
      _
    $region3: #{tpu_custom_call.1} parent=1 // pred_check_branch
      %9 = sbr.rel (0) target = $region5
    $region4: #{tpu_custom_call.1} parent=1 // pred_region
      %s11 = ssub.s32 64, 64
      %12 = vsyncadd [#allocation3], %s11
      %s14 = sshll.u32 [#allocation2], 4
      %s15 = int_to_ptr.vmem [resolvable:$true] %s14
      %17 = dma.hbm_to_vmem [thread:$0]  %s0, 64, %s15, [#allocation3]
    $region5: #{tpu_custom_call.1} parent=1 // pred_fallthru
      _
    // Predicated region
    $region6: #{tpu_custom_call.1} parent=1 // pred_check
      _
    $region7: #{tpu_custom_call.1} parent=1 // pred_check_branch
      %19 = sbr.rel (0) target = $region9
    $region8: #{tpu_custom_call.1} parent=1 // pred_region
      %20 = dma.done [#allocation3], 64
    $region9: #{tpu_custom_call.1} parent=1 // pred_fallthru
      _
    %v21 = vld [vmem:[#allocation2] sm:$0xf]
    %v22 = vlaneseq
    %v23 = vand.u32 %v22, 127
    %25 = vrot.lane.b32.xlu0 %v21, 127
    %v26 = vpop.permute.xlu0 %25
    %28 = vrot.lane.b32.xlu0 %v21, 1
    %v29 = vpop.permute.xlu0 %28
    %v31 = vand.u32 %v23, 1
    %vm32 = vcmp.eq.s32.totalorder %v31, 0
    %v33 = vsel %vm32, 1, 0
    %vm34 = vcmp.eq.s32.totalorder %v33, 1
    %v35 = vsel %vm34, %v26, %v29
    %v36 = vadd.f32 %v21, %v35
    %38 = vrot.lane.b32.xlu0 %v36, 126
    %v39 = vpop.permute.xlu0 %38
    %41 = vrot.lane.b32.xlu0 %v36, 2
    %v42 = vpop.permute.xlu0 %41
    %v44 = vand.u32 %v23, 2
    %vm45 = vcmp.eq.s32.totalorder %v44, 0
    %v46 = vsel %vm45, 1, 0
    %vm47 = vcmp.eq.s32.totalorder %v46, 1
    %v48 = vsel %vm47, %v39, %v42
    %v49 = vadd.f32 %v36, %v48
    %51 = vrot.lane.b32.xlu0 %v49, 124
    %v52 = vpop.permute.xlu0 %51
    %54 = vrot.lane.b32.xlu0 %v49, 4
    %v55 = vpop.permute.xlu0 %54
    %v57 = vand.u32 %v23, 4
    %vm58 = vcmp.eq.s32.totalorder %v57, 0
    %v59 = vsel %vm58, 1, 0
    %vm60 = vcmp.eq.s32.totalorder %v59, 1
    %v61 = vsel %vm60, %v52, %v55
    %v62 = vadd.f32 %v49, %v61
    %64 = vrot.lane.b32.xlu0 %v62, 120
    %v65 = vpop.permute.xlu0 %64
    %67 = vrot.lane.b32.xlu0 %v62, 8
    %v68 = vpop.permute.xlu0 %67
    %v70 = vand.u32 %v23, 8
    %vm71 = vcmp.eq.s32.totalorder %v70, 0
    %v72 = vsel %vm71, 1, 0
    %vm73 = vcmp.eq.s32.totalorder %v72, 1
    %v74 = vsel %vm73, %v65, %v68
    %v75 = vadd.f32 %v62, %v74
    %77 = vrot.lane.b32.xlu0 %v75, 112
    %v78 = vpop.permute.xlu0 %77
    %80 = vrot.lane.b32.xlu0 %v75, 16
    %v81 = vpop.permute.xlu0 %80
    %v83 = vand.u32 %v23, 16
    %vm84 = vcmp.eq.s32.totalorder %v83, 0
    %v85 = vsel %vm84, 1, 0
    %vm86 = vcmp.eq.s32.totalorder %v85, 1
    %v87 = vsel %vm86, %v78, %v81
    %v88 = vadd.f32 %v75, %v87
    %v89 = vmul.f32 %v88, 0.03125
    %v90 = vsub.f32 %v21, %v89
    %v91 = vmul.f32 %v90, %v90
    %93 = vrot.lane.b32.xlu0 %v91, 127
    %v94 = vpop.permute.xlu0 %93
    %96 = vrot.lane.b32.xlu0 %v91, 1
    %v97 = vpop.permute.xlu0 %96
    %v99 = vsel %vm34, %v94, %v97
    %v100 = vadd.f32 %v91, %v99
    %102 = vrot.lane.b32.xlu0 %v100, 126
    %v103 = vpop.permute.xlu0 %102
    %105 = vrot.lane.b32.xlu0 %v100, 2
    %v106 = vpop.permute.xlu0 %105
    %v108 = vsel %vm47, %v103, %v106
    %v109 = vadd.f32 %v100, %v108
    %111 = vrot.lane.b32.xlu0 %v109, 124
    %v112 = vpop.permute.xlu0 %111
    %114 = vrot.lane.b32.xlu0 %v109, 4
    %v115 = vpop.permute.xlu0 %114
    %v117 = vsel %vm60, %v112, %v115
    %v118 = vadd.f32 %v109, %v117
    %120 = vrot.lane.b32.xlu0 %v118, 120
    %v121 = vpop.permute.xlu0 %120
    %123 = vrot.lane.b32.xlu0 %v118, 8
    %v124 = vpop.permute.xlu0 %123
    %v126 = vsel %vm73, %v121, %v124
    %v127 = vadd.f32 %v118, %v126
    %129 = vrot.lane.b32.xlu0 %v127, 112
    %v130 = vpop.permute.xlu0 %129
    %132 = vrot.lane.b32.xlu0 %v127, 16
    %v133 = vpop.permute.xlu0 %132
    %v135 = vsel %vm86, %v130, %v133
    %v136 = vadd.f32 %v127, %v135
    %v137 = vmul.f32 %v136, 0.032258064
    %v138 = vmax.f32 %v137, 0.0
    %v139 = vrsqrt.pop %v138
    %v140 = vmul.f32 %v138, %v139
    %vm141 = vcmp.eq.f32.partialorder %v138, inf
    %v142 = vsel %vm141, %v138, %v140
    %vm143 = vcmp.eq.f32.partialorder %v138, 0.0
    %v144 = vand.u32 %v138, 2147483648
    %v145 = vsel %vm143, %v144, %v142
    %v146 = vadd.f32 %v145, 1e-09
    %v147 = vrcp.pop %v146
    %v148 = vmul.f32 %v90, %v147
    %v149 = vxor.u32 %v21, 2147483648
    %v150 = vmul.f32 %v149, 1.442695
    %v151 = vpow.pop %v150
    %v152 = vadd.f32 %v151, 1.0
    %v153 = vrcp.pop %v152
    %v154 = vmul.f32 1.0, %v153
    %v155 = vmul.f32 %v154, %v148
    %156 = vst [vmem:[#allocation5] sm:$0xf] %v155
    // Predicated region
    $region10: #{tpu_custom_call.1} parent=1 // pred_check
      _
    $region11: #{tpu_custom_call.1} parent=1 // pred_check_branch
      %158 = sbr.rel (0) target = $region13
    $region12: #{tpu_custom_call.1} parent=1 // pred_region
      %s160 = ssub.s32 64, 64
      %161 = vsyncadd [#allocation4], %s160
      %s163 = sshll.u32 [#allocation5], 4
      %s164 = int_to_ptr.vmem [resolvable:$true] %s163
      %166 = dma.vmem_to_hbm [thread:$0]  %s164, 64, %s1, [#allocation4]
    $region13: #{tpu_custom_call.1} parent=1 // pred_fallthru
      _
    // Predicated region
    $region14: #{tpu_custom_call.1} parent=1 // pred_check
      _
    $region15: #{tpu_custom_call.1} parent=1 // pred_check_branch
      %168 = sbr.rel (0) target = $region17
    $region16: #{tpu_custom_call.1} parent=1 // pred_region
      %169 = dma.done [#allocation4], 64
    $region17: #{tpu_custom_call.1} parent=1 // pred_fallthru
      _
    %170 = vsyncpa [#allocation3], 1
    %171 = vsyncpa [#allocation4], 1

</llo_original>
